<compile_context>
chip_gen: v7x
topology: tpu7x:2x2x1
jax: 0.10.0
libtpu: 0.0.40
codegen_flags: <defaults>
</compile_context>

<pallas_src>
import jax
import jax.numpy as jnp
from jax.experimental import pallas as pl
from jax.experimental.pallas import tpu as pltpu


def _dot_prod_attention_kernel(q_ref, ctx_ref, out_ref, attn_ref):
    # Compute in f32 regardless of the storage dtype.
    q = q_ref[...].astype(jnp.float32)        # (TB, H)
    ctx = ctx_ref[...].astype(jnp.float32)    # (TB, S, H)

    # 1. e = q * k : scores[b, s] = sum_h q[b, h] * ctx[b, s, h]
    #    VPU multiply + lane reduce over H (no ctx^T, no M=1 MXU matmul).
    scores = jnp.sum(q[:, None, :] * ctx, axis=-1)          # (TB, S)

    # softmax over the seq axis (dim=2 in the PyTorch module)
    m = jnp.max(scores, axis=-1, keepdims=True)
    e = jnp.exp(scores - m)
    denom = jnp.sum(e, axis=-1, keepdims=True)
    attn = e * pl.reciprocal(denom, approx=True)             # (TB, S)

    # 2. tanh(softmax(e) * k): out[b, h] = tanh(sum_s attn[b, s] * ctx[b, s, h])
    out = jnp.tanh(jnp.sum(attn[:, :, None] * ctx, axis=1))  # (TB, H)

    out_ref[...] = out.astype(out_ref.dtype)
    attn_ref[...] = attn.astype(attn_ref.dtype)


def _pick_block_b(B, S, H, itemsize=4, vmem_budget_bytes=8 * 1024 * 1024):
    """Largest batch tile (multiple of 8 sublanes) dividing B that keeps the
    double-buffered context slab under a conservative VMEM budget (sized for
    the smallest default scoped limit, v5e's 16 MiB)."""
    for tb in (128, 64, 32, 16, 8):
        if B % tb == 0 and 2 * tb * S * H * itemsize <= vmem_budget_bytes:
            return tb
    # Small or awkward batch: a single block covering the whole batch.
    return B


def dot_prod_attention(output, context, *, block_b=None):
    """output: (B, 1, H), context: (B, S, H) -> (out (B,1,H), attn (B,1,S))."""
    B, one, H = output.shape
    assert one == 1
    Bc, S, Hc = context.shape
    assert Bc == B and Hc == H

    if block_b is None:
        block_b = _pick_block_b(B, S, H)
    assert B % block_b == 0, "batch tile must divide batch"

    # Squeeze the singleton query dim so the kernel sees dense (TB, H) slabs.
    q2d = output.reshape(B, H)

    grid_spec = pltpu.PrefetchScalarGridSpec(
        num_scalar_prefetch=0,
        grid=(B // block_b,),
        in_specs=[
            pl.BlockSpec((block_b, H), lambda b: (b, 0)),        # queries
            pl.BlockSpec((block_b, S, H), lambda b: (b, 0, 0)),  # context
        ],
        out_specs=[
            pl.BlockSpec((block_b, H), lambda b: (b, 0)),        # out
            pl.BlockSpec((block_b, S), lambda b: (b, 0)),        # attn
        ],
    )

    out2d, attn2d = pl.pallas_call(
        _dot_prod_attention_kernel,
        out_shape=(
            jax.ShapeDtypeStruct((B, H), output.dtype),
            jax.ShapeDtypeStruct((B, S), output.dtype),
        ),
        grid_spec=grid_spec,
        compiler_params=pltpu.CompilerParams(
            dimension_semantics=("parallel",),
        ),
    )(q2d, context)

    return out2d.reshape(B, 1, H), attn2d.reshape(B, 1, S)


def _reference(output, context):
    # Pure-JAX reference mirroring the PyTorch forward.
    attn = jnp.einsum("bqh,bsh->bqs", output, context)
    attn = jax.nn.softmax(attn, axis=2)
    out = jnp.tanh(jnp.einsum("bqs,bsh->bqh", attn, context))
    return out, attn


if __name__ == "__main__":
    B, S, H = 2, 8, 32
    key = jax.random.PRNGKey(0)
    k1, k2 = jax.random.split(key)
    output = jax.random.normal(k1, (B, 1, H), dtype=jnp.float32)
    context = jax.random.normal(k2, (B, S, H), dtype=jnp.float32)

    out, attn = dot_prod_attention(output, context)
    jax.block_until_ready((out, attn))

    out_ref, attn_ref = _reference(output, context)
    # pl.reciprocal(approx=True) in the softmax denominator has ~1e-3-level
    # relative error, so compare at a matching tolerance.
    assert out.shape == (B, 1, H) and attn.shape == (B, 1, S)
    assert jnp.allclose(out, out_ref, atol=5e-3, rtol=5e-3), "output mismatch"
    assert jnp.allclose(attn, attn_ref, atol=5e-3, rtol=5e-3), "attn mismatch"

    print("KERNEL_OK")
</pallas_src>

<mosaic_0001>
module attributes {stable_mosaic.version = 11 : i64} {
  func.func @_dot_prod_attention_kernel(%arg0: i32, %arg1: memref<2x32xf32, #tpu.memory_space<vmem>>, %arg2: memref<2x8x32xf32, #tpu.memory_space<vmem>>, %arg3: memref<2x32xf32, #tpu.memory_space<vmem>>, %arg4: memref<2x8xf32, #tpu.memory_space<vmem>>) attributes {dimension_semantics = [#tpu.dimension_semantics<parallel>], iteration_bounds = array<i64: 1>, scalar_prefetch = 0 : i64, scratch_operands = 0 : i64, tpu.core_type = #tpu.core_type<tc>, window_params = [{transform_indices = @transform_0, window_bounds = array<i64: 2, 32>}, {transform_indices = @transform_1, window_bounds = array<i64: 2, 8, 32>}, {transform_indices = @transform_2, window_bounds = array<i64: 2, 32>}, {transform_indices = @transform_3, window_bounds = array<i64: 2, 8>}]} {
    %c0 = arith.constant 0 : index
    %c0_0 = arith.constant 0 : index
    %0 = vector.load %arg1[%c0, %c0_0] : memref<2x32xf32, #tpu.memory_space<vmem>>, vector<2x32xf32>
    %c0_1 = arith.constant 0 : index
    %c0_2 = arith.constant 0 : index
    %c0_3 = arith.constant 0 : index
    %1 = vector.load %arg2[%c0_1, %c0_2, %c0_3] : memref<2x8x32xf32, #tpu.memory_space<vmem>>, vector<2x8x32xf32>
    %2 = vector.shape_cast %0 : vector<2x32xf32> to vector<2x1x32xf32>
    %3 = vector.broadcast %2 : vector<2x1x32xf32> to vector<2x8x32xf32>
    %4 = arith.mulf %3, %1 : vector<2x8x32xf32>
    %cst = arith.constant dense<0.000000e+00> : vector<2x8xf32>
    %5 = vector.multi_reduction <add>, %4, %cst [2] : vector<2x8x32xf32> to vector<2x8xf32>
    %cst_4 = arith.constant dense<0xFF800000> : vector<2xf32>
    %6 = vector.multi_reduction <maximumf>, %5, %cst_4 [1] : vector<2x8xf32> to vector<2xf32>
    %7 = vector.shape_cast %6 : vector<2xf32> to vector<2x1xf32>
    %8 = vector.broadcast %7 : vector<2x1xf32> to vector<2x8xf32>
    %9 = arith.subf %5, %8 : vector<2x8xf32>
    %10 = math.exp %9 : vector<2x8xf32>
    %cst_5 = arith.constant dense<0.000000e+00> : vector<2xf32>
    %11 = vector.multi_reduction <add>, %10, %cst_5 [1] : vector<2x8xf32> to vector<2xf32>
    %12 = vector.shape_cast %11 : vector<2xf32> to vector<2x1xf32>
    %13 = tpu.reciprocal %12 {approx = true} : vector<2x1xf32> -> vector<2x1xf32>
    %14 = vector.broadcast %13 : vector<2x1xf32> to vector<2x8xf32>
    %15 = arith.mulf %10, %14 : vector<2x8xf32>
    %16 = vector.shape_cast %15 : vector<2x8xf32> to vector<2x8x1xf32>
    %17 = vector.broadcast %16 : vector<2x8x1xf32> to vector<2x8x32xf32>
    %18 = arith.mulf %17, %1 : vector<2x8x32xf32>
    %cst_6 = arith.constant dense<0.000000e+00> : vector<2x32xf32>
    %19 = vector.multi_reduction <add>, %18, %cst_6 [1] : vector<2x8x32xf32> to vector<2x32xf32>
    %20 = math.tanh %19 : vector<2x32xf32>
    %c0_7 = arith.constant 0 : index
    %c0_8 = arith.constant 0 : index
    %21 = vector.load %arg3[%c0_7, %c0_8] : memref<2x32xf32, #tpu.memory_space<vmem>>, vector<2x32xf32>
    tpu.vector_store %arg3[%c0_7, %c0_8], %20 {strides = array<i32>} : memref<2x32xf32, #tpu.memory_space<vmem>>, vector<2x32xf32>,
    %c0_9 = arith.constant 0 : index
    %c0_10 = arith.constant 0 : index
    %22 = vector.load %arg4[%c0_9, %c0_10] : memref<2x8xf32, #tpu.memory_space<vmem>>, vector<2x8xf32>
    tpu.vector_store %arg4[%c0_9, %c0_10], %15 {strides = array<i32>} : memref<2x8xf32, #tpu.memory_space<vmem>>, vector<2x8xf32>,
    return
  }
  func.func @transform_0(%arg0: i32) -> (i32, i32) {
    %c0_i32 = arith.constant 0 : i32
    %c0_i32_0 = arith.constant 0 : i32
    return %arg0, %c0_i32 : i32, i32
  }
  func.func @transform_1(%arg0: i32) -> (i32, i32, i32) {
    %c0_i32 = arith.constant 0 : i32
    %c0_i32_0 = arith.constant 0 : i32
    %c0_i32_1 = arith.constant 0 : i32
    return %arg0, %c0_i32, %c0_i32_0 : i32, i32, i32
  }
  func.func @transform_2(%arg0: i32) -> (i32, i32) {
    %c0_i32 = arith.constant 0 : i32
    %c0_i32_0 = arith.constant 0 : i32
    return %arg0, %c0_i32 : i32, i32
  }
  func.func @transform_3(%arg0: i32) -> (i32, i32) {
    %c0_i32 = arith.constant 0 : i32
    %c0_i32_0 = arith.constant 0 : i32
    return %arg0, %c0_i32 : i32, i32
  }
}

</mosaic_0001>

<llo_original>
// kernel: tpu_custom_call.1
$region0: #{tpu_custom_call.1}
  #allocation0 [shape = 'u32[]', space=smem, size = 0x4, offset = 0x4, fixed_abs, tag = 'smem constant byte address 0x4 - core index']
  #allocation1 [shape = 'u32[144,128]{1,0:T(1,128)}', space=vmem, size = 0x12000, scoped, tag = 'internal scratch']
  %s0 = inlined_call_operand.hbm [shape: f32[2,32], index: 0, kind: input, shape index: {}]
  %s1 = inlined_call_operand.hbm [shape: f32[2,8,32], index: 1, kind: input, shape index: {}]
  %s2 = inlined_call_operand.hbm [shape: f32[2,32], index: 2, kind: output, shape index: {0}]
  %s3 = inlined_call_operand.hbm [shape: f32[2,8], index: 3, kind: output, shape index: {1}]
  %4 = xla_tuple %s2, %s3
  %s5 = sld [smem:[#allocation0]]
  $region34: #{tpu_custom_call.1} parent=0
    _
  %s7 = ssub.s32 1, %s5
  %s8 = scalar_select 0, %s7, %s5
  $region1: #{tpu_custom_call.1} parent=0
    #allocation2 [shape = 'u8[1024]{0}', space=vmem, size = 0x400, scoped, tag = 'input window, operand 0, single buffered']
    #allocation3 [shape = 's32[1]{0}', space=sflag, size = 0x4, scoped, tag = 'scoped memory for tpu_custom_call.1']
    #allocation4 [shape = 's32[1]{0}', space=sflag, size = 0x4, scoped, tag = 'scoped memory for tpu_custom_call.1']
    #allocation5 [shape = 'u8[8192]{0}', space=vmem, size = 0x2000, scoped, tag = 'input window, operand 1, single buffered']
    #allocation6 [shape = 's32[1]{0}', space=sflag, size = 0x4, scoped, tag = 'scoped memory for tpu_custom_call.1']
    #allocation7 [shape = 'u8[1024]{0}', space=vmem, size = 0x400, scoped, tag = 'output window, operand 0, single buffered']
    #allocation8 [shape = 'u8[1024]{0}', space=vmem, size = 0x400, scoped, tag = 'output window, operand 1, single buffered']
    #allocation9 [shape = 's32[1]{0}', space=sflag, size = 0x4, scoped, tag = 'scoped memory for tpu_custom_call.1']
    %9 = vsyncpa [#allocation3], 0
    %10 = vsyncpa [#allocation6], 0
    %11 = vsyncpa [#allocation4], 0
    %12 = vsyncpa [#allocation9], 0
    // Predicated region
    $region2: #{tpu_custom_call.1} parent=1 // pred_check
      _
    $region3: #{tpu_custom_call.1} parent=1 // pred_check_branch
      %14 = sbr.rel (0) target = $region5
    $region4: #{tpu_custom_call.1} parent=1 // pred_region
      %s16 = ssub.s32 32, 32
      %17 = vsyncadd [#allocation3], %s16
      %s19 = sshll.u32 [#allocation2], 4
      %s20 = int_to_ptr.vmem [resolvable:$true] %s19
      %22 = dma.hbm_to_vmem [thread:$0]  %s0, 32, %s20, [#allocation3]
    $region5: #{tpu_custom_call.1} parent=1 // pred_fallthru
      _
    // Predicated region
    $region6: #{tpu_custom_call.1} parent=1 // pred_check
      _
    $region7: #{tpu_custom_call.1} parent=1 // pred_check_branch
      %24 = sbr.rel (0) target = $region9
    $region8: #{tpu_custom_call.1} parent=1 // pred_region
      %s26 = ssub.s32 256, 256
      %27 = vsyncadd [#allocation6], %s26
      %s28 = sshll.u32 [#allocation5], 4
      %s29 = int_to_ptr.vmem [resolvable:$true] %s28
      %34 = dma.hbm_to_vmem [thread:$0]  %s1, 256, %s29, [#allocation6], 128, 128, 8
    $region9: #{tpu_custom_call.1} parent=1 // pred_fallthru
      _
    // Predicated region
    $region10: #{tpu_custom_call.1} parent=1 // pred_check
      _
    $region11: #{tpu_custom_call.1} parent=1 // pred_check_branch
      %36 = sbr.rel (0) target = $region13
    $region12: #{tpu_custom_call.1} parent=1 // pred_region
      %37 = dma.done [#allocation3], 32
    $region13: #{tpu_custom_call.1} parent=1 // pred_fallthru
      _
    // Predicated region
    $region14: #{tpu_custom_call.1} parent=1 // pred_check
      _
    $region15: #{tpu_custom_call.1} parent=1 // pred_check_branch
      %39 = sbr.rel (0) target = $region17
    $region16: #{tpu_custom_call.1} parent=1 // pred_region
      %40 = dma.done [#allocation6], 256
    $region17: #{tpu_custom_call.1} parent=1 // pred_fallthru
      _
    %v41 = vld [vmem:[#allocation2] sm:$0x3]
    %v42 = vld [vmem:[#allocation5] sm:$0xff]
    %v43 = vld [vmem:[#allocation5 + $0x8] sm:$0xff]
    %v46 = vunpack.c.l.s4 1966171168
    %v47 = vunpack.c.0.s8 %v46
    %v48 = vlaneseq
    %v49 = vshrl.u32 %v48, 7
    %v50 = vsub.s32 %v47, %v49
    %v51 = vrot.slane %v41, %v50
    %v52 = vcombine.high %v51, %v51
    %v54 = vunpack.c.l.s4 1966171168
    %v55 = vunpack.c.0.s8 %v54
    %v56 = vlaneseq
    %v57 = vshrl.u32 %v56, 7
    %v58 = vsub.s32 %v55, %v57
    %v59 = vrot.slane %v51, %v58
    %v61 = vunpack.c.l.s4 1966171168
    %v62 = vunpack.c.0.s8 %v61
    %v63 = vlaneseq
    %v64 = vshrl.u32 %v63, 7
    %v65 = vsub.s32 %v62, %v64
    %v66 = vrot.slane %v52, %v65
    %v67 = vlaneseq
    %v68 = vshrl.u32 %v67, 7
    %v69 = vsub.s32 0, %v68
    %v70 = vrot.slane %v59, %v69
    %v71 = vlaneseq
    %v72 = vshrl.u32 %v71, 7
    %v73 = vsub.s32 0, %v72
    %v74 = vrot.slane %v66, %v73
    %v77 = vmul.f32 %v70, %v42
    %v78 = vmul.f32 %v74, %v43
    %vm79 = vcmask 261120
    %v80 = vsel %vm79, %v77, 0.0
    %81 = vadd.xlane.f32.xlu0 %v80
    %v82 = vpop.xlane.xlu0 %81
    %v83 = vsel %vm79, %v78, 0.0
    %84 = vadd.xlane.f32.xlu0 %v83
    %v85 = vpop.xlane.xlu0 %84
    %v88 = vlaneseq
    %v89 = vand.u32 %v88, 127
    %v90 = vlaneseq
    %v91 = vshrl.u32 %v90, 7
    %v92 = vsub.s32 %v89, %v91
    %v93 = vrot.slane %v82, %v92
    %v94 = vlaneseq
    %v95 = vshrl.u32 %v94, 7
    %v96 = vsub.s32 %v89, %v95
    %v97 = vrot.slane %v85, %v96
    %vm98 = vcmask 1041409
    %v99 = vsel %vm98, %v97, %v93
    %vm101 = vcmask 58368
    %v102 = vsel %vm101, %v99, -inf
    %103 = vmax.xlane.f32.xlu0 %v102
    %v104 = vpop.xlane.xlu0 %103
    %v106 = vlaneseq
    %v107 = vshrl.u32 %v106, 7
    %v108 = vsub.s32 0, %v107
    %v109 = vrot.slane %v104, %v108
    %v110 = vlaneseq
    %v111 = vshrl.u32 %v110, 7
    %v112 = vsub.s32 1, %v111
    %v113 = vrot.slane %v104, %v112
    %v116 = vsub.f32 %v82, %v109
    %v117 = vsub.f32 %v85, %v113
    %v118 = vmul.f32 %v116, 1.442695
    %v119 = vpow.pop %v118
    %v120 = vmul.f32 %v117, 1.442695
    %v121 = vpow.pop %v120
    %124 = vset.pattern.permute.xlu0 0
    %125 = vperm.xlu0 %124, %v119
    %v126 = vpop.permute.xlu0 %125
    %127 = vset.pattern.permute.xlu0 0
    %128 = vperm.xlu0 %127, %v121
    %v129 = vpop.permute.xlu0 %128
    %v130 = vlaneseq
    %v131 = vshrl.u32 %v130, 7
    %v132 = vsub.s32 %v89, %v131
    %v133 = vrot.slane %v126, %v132
    %v134 = vlaneseq
    %v135 = vshrl.u32 %v134, 7
    %v136 = vsub.s32 %v89, %v135
    %v137 = vrot.slane %v129, %v136
    %v138 = vsel %vm98, %v137, %v133
    %v140 = vsel %vm101, %v138, 0.0
    %141 = vadd.xlane.f32.xlu0 %v140
    %v142 = vpop.xlane.xlu0 %141
    %v143 = vrcp.pop %v142
    %v145 = vlaneseq
    %v146 = vshrl.u32 %v145, 7
    %v147 = vsub.s32 0, %v146
    %v148 = vrot.slane %v143, %v147
    %v149 = vlaneseq
    %v150 = vshrl.u32 %v149, 7
    %v151 = vsub.s32 1, %v150
    %v152 = vrot.slane %v143, %v151
    %v155 = vmul.f32 %v119, %v148
    %v156 = vmul.f32 %v121, %v152
    %158 = vset.pattern.permute.xlu0 0
    %159 = vperm.xlu0 %158, %v155
    %v160 = vpop.permute.xlu0 %159
    %163 = vset.pattern.permute.xlu0 0
    %164 = vperm.xlu0 %163, %v156
    %v165 = vpop.permute.xlu0 %164
    %v167 = vmul.f32 %v160, %v42
    %v168 = vmul.f32 %v165, %v43
    %v169 = vsel %vm79, %v167, 0.0
    %v170 = vrot.slane %v169, 4
    %v171 = vadd.f32 %v169, %v170
    %v172 = vrot.slane %v171, 2
    %v173 = vadd.f32 %v171, %v172
    %v174 = vrot.slane %v173, 1
    %v175 = vadd.f32 %v173, %v174
    %v176 = vsel %vm79, %v168, 0.0
    %v177 = vrot.slane %v176, 4
    %v178 = vadd.f32 %v176, %v177
    %v179 = vrot.slane %v178, 2
    %v180 = vadd.f32 %v178, %v179
    %v181 = vrot.slane %v180, 1
    %v182 = vadd.f32 %v180, %v181
    %v183 = vtanh.pop %v175
    %v184 = vtanh.pop %v182
    %v187 = vsel %vm98, %v184, %v183
    %vm189 = vcmask 254976
    %190 = vst.msk [vmem:[#allocation7] sm:$0x3] %vm189, %v187
    %v191 = vlaneseq
    %v192 = vshrl.u32 %v191, 7
    %v193 = vsub.s32 %v89, %v192
    %v194 = vrot.slane %v160, %v193
    %v195 = vlaneseq
    %v196 = vshrl.u32 %v195, 7
    %v197 = vsub.s32 %v89, %v196
    %v198 = vrot.slane %v165, %v197
    %v199 = vsel %vm98, %v198, %v194
    %201 = vst.msk [vmem:[#allocation8] sm:$0x3] %vm101, %v199
    // Predicated region
    $region18: #{tpu_custom_call.1} parent=1 // pred_check
      _
    $region19: #{tpu_custom_call.1} parent=1 // pred_check_branch
      %203 = sbr.rel (0) target = $region21
    $region20: #{tpu_custom_call.1} parent=1 // pred_region
      %s205 = ssub.s32 32, 32
      %206 = vsyncadd [#allocation4], %s205
      %s208 = sshll.u32 [#allocation7], 4
      %s209 = int_to_ptr.vmem [resolvable:$true] %s208
      %211 = dma.vmem_to_hbm [thread:$0]  %s209, 32, %s2, [#allocation4]
    $region21: #{tpu_custom_call.1} parent=1 // pred_fallthru
      _
    // Predicated region
    $region22: #{tpu_custom_call.1} parent=1 // pred_check
      _
    $region23: #{tpu_custom_call.1} parent=1 // pred_check_branch
      %213 = sbr.rel (0) target = $region25
    $region24: #{tpu_custom_call.1} parent=1 // pred_region
      %s215 = ssub.s32 32, 32
      %216 = vsyncadd [#allocation9], %s215
      %s218 = sshll.u32 [#allocation8], 4
      %s219 = int_to_ptr.vmem [resolvable:$true] %s218
      %221 = dma.vmem_to_hbm [thread:$0]  %s219, 32, %s3, [#allocation9]
    $region25: #{tpu_custom_call.1} parent=1 // pred_fallthru
      _
    // Predicated region
    $region26: #{tpu_custom_call.1} parent=1 // pred_check
      _
    $region27: #{tpu_custom_call.1} parent=1 // pred_check_branch
      %223 = sbr.rel (0) target = $region29
    $region28: #{tpu_custom_call.1} parent=1 // pred_region
      %224 = dma.done [#allocation4], 32
    $region29: #{tpu_custom_call.1} parent=1 // pred_fallthru
      _
    // Predicated region
    $region30: #{tpu_custom_call.1} parent=1 // pred_check
      _
    $region31: #{tpu_custom_call.1} parent=1 // pred_check_branch
      %226 = sbr.rel (0) target = $region33
    $region32: #{tpu_custom_call.1} parent=1 // pred_region
      %227 = dma.done [#allocation9], 32
    $region33: #{tpu_custom_call.1} parent=1 // pred_fallthru
      _
    %228 = vsyncpa [#allocation3], 1
    %229 = vsyncpa [#allocation6], 1
    %230 = vsyncpa [#allocation4], 1
    %231 = vsyncpa [#allocation9], 1

</llo_original>
